<compile_context>
chip_gen: v7x
topology: tpu7x:2x2x1
jax: 0.10.0
libtpu: 0.0.40
codegen_flags: <defaults>
</compile_context>

<pallas_src>
import functools

import jax
import jax.numpy as jnp
from jax.experimental import pallas as pl
from jax.experimental.pallas import tpu as pltpu

_MIB = 1 << 20


def _cdiv(a: int, b: int) -> int:
    return -(-a // b)


def _round_up(x: int, m: int) -> int:
    return _cdiv(x, m) * m


def _round_down(x: int, m: int) -> int:
    return (x // m) * m


def _vmem_capacity_bytes() -> int:
    """Per-core VMEM capacity; conservative (v7x-sized) fallback if unknown."""
    try:
        return int(pltpu.get_tpu_info().vmem_capacity_bytes)
    except Exception:
        return 64 * _MIB


def _plan(batch_rows: int, d_eff: int, k_pack: int,
          x_itemsize: int, out_itemsize: int):
    """Pick (tile_r, tile_d, vmem_limit_bytes).

    Sizing is byte-based (not row-based), lane-padding aware
    (ceil(d/128)*128 bytes per row in VMEM), and VMEM-generation aware.
    """
    cap = _vmem_capacity_bytes()
    if cap >= 100 * _MIB:          # v5e / v6e: 128 MiB per TensorCore
        vmem_limit = 96 * _MIB
        budget = 40 * _MIB         # x-stream + out + accumulator working set
    else:                          # v7x: 64 MiB per TensorCore
        vmem_limit = 44 * _MIB
        budget = 20 * _MIB

    lane_d = _round_up(d_eff, 128)
    # Bytes per unit of tile_r: double-buffered x rows + double-buffered out
    # columns + f32 accumulator column.
    per_r = 2 * lane_d * x_itemsize + 2 * k_pack * out_itemsize + 4 * k_pack
    # Resident (double-buffered) weight tile + slack.
    fixed = 2 * k_pack * lane_d * x_itemsize + 2 * _MIB

    tile_r = _round_down(max(budget - fixed, 0) // per_r, 128)

    if tile_r >= 128:
        # No K-tiling needed.  Don't over-pad tiny batches; aim for >= 4 grid
        # steps (>= 2 per TensorCore on v7x) when there is enough work.
        tile_r = min(tile_r, _round_up(batch_rows, 128))
        if batch_rows > 4 * 128:
            tile_r = min(tile_r, max(128, _round_up(_cdiv(batch_rows, 4), 128)))
        tile_r = max(tile_r, 128)
        return tile_r, d_eff, vmem_limit

    # Even a 128-row tile of the full feature dim blows the budget -> K-tile
    # the reduction when the feature dim is 128-aligned.
    tile_r = 128
    if d_eff % 128 == 0:
        fixed2 = 2 * k_pack * out_itemsize * tile_r + 4 * k_pack * tile_r + 2 * _MIB
        per_q = 2 * (tile_r + k_pack) * 128 * x_itemsize  # x + w tiles, dbl-buffered
        m = d_eff // 128
        max_q = max(int((budget - fixed2) // per_q), 1)
        q = 1
        for cand in range(min(m, max_q), 0, -1):
            if m % cand == 0:
                q = cand
                break
        return tile_r, 128 * q, vmem_limit

    # TODO(synk): masked K-tiling for huge, non-128-aligned feature dims; for
    # now keep the whole feature dim resident and raise the scoped-VMEM limit.
    need = (2 * tile_r * lane_d * x_itemsize
            + 2 * k_pack * lane_d * x_itemsize
            + 2 * k_pack * out_itemsize * tile_r + 4 * k_pack * tile_r
            + 4 * _MIB)
    vmem_limit = max(vmem_limit, min(need, cap - 8 * _MIB))
    return tile_r, d_eff, vmem_limit


def dis_kernel(x_ref, w_ref, b_ref, o_ref, acc_ref, *, negative_slope, precision):
    # x_ref: (TILE_R, TILE_D)  VMEM, streamed (double-buffered by BlockSpec)
    # w_ref: (K, TILE_D)       VMEM, tiny (block-diagonal packed weight)
    # b_ref: (1, 1)            SMEM scalar bias
    # o_ref: (K, TILE_R)       VMEM, lane-dense output slab
    # acc_ref: (K, TILE_R) f32 VMEM accumulator (resident across K grid axis)
    kj = pl.program_id(1)

    @pl.when(kj == 0)
    def _():
        acc_ref[...] = jnp.zeros_like(acc_ref)

    # (K, D) contracted with (TILE_R, D) over D -> (K, TILE_R).
    # q.kT-style transposed-RHS matmul: MXU consumes it directly, no XLU
    # transpose of the streamed x tile is materialized; result is lane-dense.
    acc_ref[...] += jax.lax.dot_general(
        w_ref[...], x_ref[...],
        dimension_numbers=(((1,), (1,)), ((), ())),
        preferred_element_type=jnp.float32,
        precision=precision,
    )

    @pl.when(kj == pl.num_programs(1) - 1)
    def _():
        y = acc_ref[...] + b_ref[0, 0]
        # LeakyReLU (slope in (0,1)): max(y, slope*y) — one fewer VPU op than
        # compare+select.
        o_ref[...] = jnp.maximum(y, negative_slope * y).astype(o_ref.dtype)


def dis_forward(x, w, b, *, negative_slope=0.01):
    """Forward of `Dis` = Linear(dim_feature, 1) -> LeakyReLU.

    x: (..., D) float32 or bfloat16
    w: (1, D)            (nn.Linear weight layout)
    b: (1,)              (nn.Linear bias)
    returns: (..., 1) in x's (compute) dtype
    """
    x = jnp.asarray(x)
    if x.dtype not in (jnp.float32, jnp.bfloat16):
        x = x.astype(jnp.float32)
    stream_dtype = x.dtype
    out_dtype = stream_dtype

    lead = x.shape[:-1]
    D = x.shape[-1]
    x2 = x.reshape(-1, D)
    B = x2.shape[0]

    w2 = jnp.asarray(w).reshape(1, D).astype(stream_dtype)
    b2 = jnp.asarray(b).reshape(1, 1).astype(jnp.float32)

    # Small-D packing: put k batch rows into one (k*D)-lane row (free,
    # contiguous reshape in HBM); weight becomes a (k, k*D) block diagonal.
    k_pack = 1
    if D < 128:
        for k in range(128 // D, 1, -1):
            if B % k == 0:
                k_pack = k
                break
    d_eff = k_pack * D
    R = B // k_pack
    x_r = x2.reshape(R, d_eff)
    if k_pack > 1:
        w_eff = jnp.kron(jnp.eye(k_pack, dtype=stream_dtype), w2)
    else:
        w_eff = w2

    tile_r, tile_d, vmem_limit = _plan(
        R, d_eff, k_pack,
        jnp.dtype(stream_dtype).itemsize, jnp.dtype(out_dtype).itemsize)

    num_r = _cdiv(R, tile_r)
    num_k = d_eff // tile_d          # exact by construction
    Rp = num_r * tile_r              # only the small output is rounded up;
                                     # x is never padded/copied in HBM.

    precision = (jax.lax.Precision.HIGHEST if stream_dtype == jnp.float32
                 else jax.lax.Precision.DEFAULT)

    out = pl.pallas_call(
        functools.partial(dis_kernel, negative_slope=negative_slope,
                          precision=precision),
        out_shape=jax.ShapeDtypeStruct((k_pack, Rp), out_dtype),
        grid=(num_r, num_k),
        in_specs=[
            pl.BlockSpec((tile_r, tile_d), lambda i, j: (i, j)),      # x: streamed
            pl.BlockSpec((k_pack, tile_d), lambda i, j: (0, j)),      # w: tiny
            pl.BlockSpec(memory_space=pltpu.MemorySpace.SMEM),        # bias scalar
        ],
        out_specs=pl.BlockSpec((k_pack, tile_r), lambda i, j: (0, i)),
        scratch_shapes=[pltpu.VMEM((k_pack, tile_r), jnp.float32)],
        compiler_params=pltpu.CompilerParams(
            dimension_semantics=("parallel", "arbitrary"),
            vmem_limit_bytes=int(vmem_limit),
        ),
        cost_estimate=pl.CostEstimate(
            flops=2 * B * D,
            transcendentals=0,
            bytes_accessed=(jnp.dtype(stream_dtype).itemsize * B * D
                            + jnp.dtype(stream_dtype).itemsize * k_pack * d_eff
                            + jnp.dtype(out_dtype).itemsize * k_pack * Rp),
        ),
    )(x_r, w_eff, b2)

    # (k, Rp) lane-dense slab -> drop tile padding -> un-interleave packed
    # rows -> (B, 1) -> original leading shape.
    out = out[:, :R].T.reshape(B, 1)
    return out.reshape(*lead, 1)


if __name__ == "__main__":
    key = jax.random.PRNGKey(0)
    kx, kw, kb = jax.random.split(key, 3)

    B = 2             # batch
    dim_feature = 32  # feature dim

    # Deterministic synthetic params, PyTorch-Linear-like init range.
    bound = 1.0 / (dim_feature ** 0.5)
    x = jax.random.normal(kx, (B, dim_feature), dtype=jnp.float32)
    w = jax.random.uniform(kw, (1, dim_feature), dtype=jnp.float32,
                           minval=-bound, maxval=bound)
    b = jax.random.uniform(kb, (1,), dtype=jnp.float32,
                           minval=-bound, maxval=bound)

    out = jax.block_until_ready(dis_forward(x, w, b))

    # Plain-JAX reference: Linear -> LeakyReLU(0.01), exact f32 elementwise.
    ref = jnp.sum(x * w, axis=-1, keepdims=True) + b.reshape(1, 1)
    ref = jnp.where(ref >= 0, ref, 0.01 * ref)

    assert out.shape == (B, 1)
    assert jnp.allclose(out, ref, atol=1e-4, rtol=1e-4)

    print("KERNEL_OK")
</pallas_src>

<mosaic_0001>
module attributes {stable_mosaic.version = 11 : i64} {
  func.func @dis_kernel(%arg0: i32, %arg1: i32, %arg2: memref<128x64xf32, #tpu.memory_space<vmem>>, %arg3: memref<2x64xf32, #tpu.memory_space<vmem>>, %arg4: memref<1x1xf32, #tpu.memory_space<smem>>, %arg5: memref<2x128xf32, #tpu.memory_space<vmem>>, %arg6: memref<2x128xf32, #tpu.memory_space<vmem>>) attributes {dimension_semantics = [#tpu.dimension_semantics<parallel>, #tpu.dimension_semantics<arbitrary>], iteration_bounds = array<i64: 1, 1>, scalar_prefetch = 0 : i64, scratch_operands = 1 : i64, tpu.core_type = #tpu.core_type<tc>, window_params = [{transform_indices = @transform_0, window_bounds = array<i64: 128, 64>}, {transform_indices = @transform_1, window_bounds = array<i64: 2, 64>}, {transform_indices = @transform_2, window_bounds = array<i64: 1, 1>}, {transform_indices = @transform_3, window_bounds = array<i64: 2, 128>}]} {
    %c0_i32 = arith.constant 0 : i32
    %0 = arith.cmpi eq, %arg1, %c0_i32 : i32
    %1 = arith.extui %0 : i1 to i32
    %c0_i32_0 = arith.constant 0 : i32
    %2 = arith.cmpi ne, %1, %c0_i32_0 : i32
    scf.if %2 {
      %cst_10 = arith.constant 0.000000e+00 : f32
      %12 = vector.broadcast %cst_10 : f32 to vector<2x128xf32>
      %c0_11 = arith.constant 0 : index
      %c0_12 = arith.constant 0 : index
      %13 = vector.load %arg6[%c0_11, %c0_12] : memref<2x128xf32, #tpu.memory_space<vmem>>, vector<2x128xf32>
      tpu.vector_store %arg6[%c0_11, %c0_12], %12 {strides = array<i32>} : memref<2x128xf32, #tpu.memory_space<vmem>>, vector<2x128xf32>,
    } else {
    }
    %c0 = arith.constant 0 : index
    %c0_1 = arith.constant 0 : index
    %3 = vector.load %arg6[%c0, %c0_1] : memref<2x128xf32, #tpu.memory_space<vmem>>, vector<2x128xf32>
    %c0_2 = arith.constant 0 : index
    %c0_3 = arith.constant 0 : index
    %4 = vector.load %arg3[%c0_2, %c0_3] : memref<2x64xf32, #tpu.memory_space<vmem>>, vector<2x64xf32>
    %c0_4 = arith.constant 0 : index
    %c0_5 = arith.constant 0 : index
    %5 = vector.load %arg2[%c0_4, %c0_5] : memref<128x64xf32, #tpu.memory_space<vmem>>, vector<128x64xf32>
    %cst = arith.constant dense<0.000000e+00> : vector<2x128xf32>
    %6 = tpu.matmul %4, %5, %cst {dimension_numbers = #tpu.dot_dimension_numbers<[1], [1], [0], [0], [0, 0, 1, 0], [], []>, precision = #tpu.contract_precision<fp32>} : vector<2x64xf32>, vector<128x64xf32>, vector<2x128xf32> -> vector<2x128xf32>
    %7 = arith.addf %3, %6 : vector<2x128xf32>
    %c0_6 = arith.constant 0 : index
    %c0_7 = arith.constant 0 : index
    %8 = vector.load %arg6[%c0_6, %c0_7] : memref<2x128xf32, #tpu.memory_space<vmem>>, vector<2x128xf32>
    tpu.vector_store %arg6[%c0_6, %c0_7], %7 {strides = array<i32>} : memref<2x128xf32, #tpu.memory_space<vmem>>, vector<2x128xf32>,
    %c0_i32_8 = arith.constant 0 : i32
    %9 = arith.cmpi eq, %arg1, %c0_i32_8 : i32
    %10 = arith.extui %9 : i1 to i32
    %c0_i32_9 = arith.constant 0 : i32
    %11 = arith.cmpi ne, %10, %c0_i32_9 : i32
    scf.if %11 {
      %c0_10 = arith.constant 0 : index
      %c0_11 = arith.constant 0 : index
      %12 = vector.load %arg6[%c0_10, %c0_11] : memref<2x128xf32, #tpu.memory_space<vmem>>, vector<2x128xf32>
      %c0_12 = arith.constant 0 : index
      %c0_13 = arith.constant 0 : index
      %13 = memref.load %arg4[%c0_12, %c0_13] : memref<1x1xf32, #tpu.memory_space<smem>>
      %14 = vector.broadcast %13 : f32 to vector<2x128xf32>
      %15 = arith.addf %12, %14 : vector<2x128xf32>
      %cst_14 = arith.constant 0.00999999977 : f32
      %16 = vector.broadcast %cst_14 : f32 to vector<2x128xf32>
      %17 = arith.mulf %16, %15 : vector<2x128xf32>
      %18 = arith.maximumf %15, %17 : vector<2x128xf32>
      %c0_15 = arith.constant 0 : index
      %c0_16 = arith.constant 0 : index
      %19 = vector.load %arg5[%c0_15, %c0_16] : memref<2x128xf32, #tpu.memory_space<vmem>>, vector<2x128xf32>
      tpu.vector_store %arg5[%c0_15, %c0_16], %18 {strides = array<i32>} : memref<2x128xf32, #tpu.memory_space<vmem>>, vector<2x128xf32>,
    } else {
    }
    return
  }
  func.func @transform_0(%arg0: i32, %arg1: i32) -> (i32, i32) {
    %c0_i32 = arith.constant 0 : i32
    return %arg0, %arg1 : i32, i32
  }
  func.func @transform_1(%arg0: i32, %arg1: i32) -> (i32, i32) {
    %c0_i32 = arith.constant 0 : i32
    %c0_i32_0 = arith.constant 0 : i32
    return %c0_i32, %arg1 : i32, i32
  }
  func.func @transform_2(%arg0: i32, %arg1: i32) -> (i32, i32) {
    %c0_i32 = arith.constant 0 : i32
    %c0_i32_0 = arith.constant 0 : i32
    %c0_i32_1 = arith.constant 0 : i32
    return %c0_i32, %c0_i32_0 : i32, i32
  }
  func.func @transform_3(%arg0: i32, %arg1: i32) -> (i32, i32) {
    %c0_i32 = arith.constant 0 : i32
    %c0_i32_0 = arith.constant 0 : i32
    return %c0_i32, %arg0 : i32, i32
  }
}

</mosaic_0001>

<llo_original>
// kernel: tpu_custom_call.1
$region0: #{tpu_custom_call.1}
  #allocation0 [shape = 'u32[]', space=smem, size = 0x4, offset = 0x4, fixed_abs, tag = 'smem constant byte address 0x4 - core index']
  #allocation1 [shape = 'u32[144,128]{1,0:T(1,128)}', space=vmem, size = 0x12000, scoped, tag = 'internal scratch']
  #allocation2 [shape = 'f32[2,128]{1,0:T(2,128)}', space=vmem, size = 0x400, scoped, tag = 'scratch operand']
  #allocation3 [shape = 'f32[1,1]{1,0:T(1,128)S(6)}', space=smem, size = 0x200, scoped, tag = 'scoped memory for tpu_custom_call.1']
  %s0 = inlined_call_operand.vmem [shape: f32[1,64], index: 0, kind: input, shape index: {}]
  %s1 = inlined_call_operand.vmem [shape: f32[2,64], index: 1, kind: input, shape index: {}]
  %s2 = inlined_call_operand.<no memory space> [shape: f32[1,1], index: 2, kind: input, shape index: {}]
  %s3 = inlined_call_operand.hbm [shape: f32[2,128], index: 3, kind: output, shape index: {}]
  %s4 = sld [smem:[#allocation0]]
  $region30: #{tpu_custom_call.1} parent=0
    _
  %s6 = ssub.s32 1, %s4
  %s7 = scalar_select 0, %s6, %s4
  %8 = sst [smem:[#allocation3]] %s2
  $region1: #{tpu_custom_call.1} parent=0
    #allocation4 [shape = 'u8[1024]{0}', space=vmem, size = 0x400, scoped, tag = 'output window, operand 0, single buffered']
    #allocation5 [shape = 's32[1]{0}', space=sflag, size = 0x4, scoped, tag = 'scoped memory for tpu_custom_call.1']
    %9 = vsyncpa [#allocation5], 0
    // Predicated region
    $region2: #{tpu_custom_call.1} parent=1 // pred_check
      _
    $region3: #{tpu_custom_call.1} parent=1 // pred_check_branch
      %11 = sbr.rel (0) target = $region5
    $region4: #{tpu_custom_call.1} parent=1 // pred_region
      _
    $region5: #{tpu_custom_call.1} parent=1 // pred_fallthru
      _
    // Predicated region
    $region6: #{tpu_custom_call.1} parent=1 // pred_check
      _
    $region7: #{tpu_custom_call.1} parent=1 // pred_check_branch
      %13 = sbr.rel (0) target = $region9
    $region8: #{tpu_custom_call.1} parent=1 // pred_region
      _
    $region9: #{tpu_custom_call.1} parent=1 // pred_fallthru
      _
    // Predicated region
    $region10: #{tpu_custom_call.1} parent=1 // pred_check
      _
    $region11: #{tpu_custom_call.1} parent=1 // pred_check_branch
      %15 = sbr.rel (0) target = $region13
    $region12: #{tpu_custom_call.1} parent=1 // pred_region
      _
    $region13: #{tpu_custom_call.1} parent=1 // pred_fallthru
      _
    %p16 = scmp.eq.s32.totalorder 0, 0
    // Predicated region
    $region14: #{tpu_custom_call.1} parent=1 // pred_check
      %p17 = pneg %p16
    $region15: #{tpu_custom_call.1} parent=1 // pred_check_branch
      %19 = sbr.rel (%p17) target = $region17
    $region16: #{tpu_custom_call.1} parent=1 // pred_region
      %20 = vst [vmem:[#allocation2] sm:$0x3] 0.0
    $region17: #{tpu_custom_call.1} parent=1 // pred_fallthru
      _
    %v21 = vld [vmem:[#allocation2] sm:$0x3]
    %v22 = vld [vmem:[%s1] sm:$0x3]
    %v23 = vld [vmem:[%s0] sm:$0xff]
    %v24 = vld [vmem:[%s0 + $0x8] sm:$0xff]
    %v25 = vld [vmem:[%s0 + $0x10] sm:$0xff]
    %v26 = vld [vmem:[%s0 + $0x18] sm:$0xff]
    %v27 = vld [vmem:[%s0 + $0x20] sm:$0xff]
    %v28 = vld [vmem:[%s0 + $0x28] sm:$0xff]
    %v29 = vld [vmem:[%s0 + $0x30] sm:$0xff]
    %v30 = vld [vmem:[%s0 + $0x38] sm:$0xff]
    %v31 = vld [vmem:[%s0 + $0x40] sm:$0xff]
    %v32 = vld [vmem:[%s0 + $0x48] sm:$0xff]
    %v33 = vld [vmem:[%s0 + $0x50] sm:$0xff]
    %v34 = vld [vmem:[%s0 + $0x58] sm:$0xff]
    %v35 = vld [vmem:[%s0 + $0x60] sm:$0xff]
    %v36 = vld [vmem:[%s0 + $0x68] sm:$0xff]
    %v37 = vld [vmem:[%s0 + $0x70] sm:$0xff]
    %v38 = vld [vmem:[%s0 + $0x78] sm:$0xff]
    %vm39 = vcmask 523264
    %v41 = vsel %vm39, %v22, 0
    %v44 = vsel %vm39, %v23, 0
    %v47 = vsel %vm39, %v24, 0
    %v50 = vsel %vm39, %v25, 0
    %v53 = vsel %vm39, %v26, 0
    %v56 = vsel %vm39, %v27, 0
    %v59 = vsel %vm39, %v28, 0
    %v62 = vsel %vm39, %v29, 0
    %v65 = vsel %vm39, %v30, 0
    %v68 = vsel %vm39, %v31, 0
    %v71 = vsel %vm39, %v32, 0
    %v74 = vsel %vm39, %v33, 0
    %v77 = vsel %vm39, %v34, 0
    %v80 = vsel %vm39, %v35, 0
    %v83 = vsel %vm39, %v36, 0
    %v86 = vsel %vm39, %v37, 0
    %v89 = vsel %vm39, %v38, 0
    %91 = vmatprep.subr.mxu0 0.0
    %v92 = vand.u32 %v44, 4294901760
    %93 = vmatpush1.xpose.msra.mxu0 %v92
    %94 = vmatprep.subr.mxu0 0.0
    %v95 = vand.u32 %v47, 4294901760
    %96 = vmatpush1.xpose.msra.mxu0 %v95
    %97 = vmatprep.subr.mxu0 0.0
    %v98 = vand.u32 %v50, 4294901760
    %99 = vmatpush1.xpose.msra.mxu0 %v98
    %100 = vmatprep.subr.mxu0 0.0
    %v101 = vand.u32 %v53, 4294901760
    %102 = vmatpush1.xpose.msra.mxu0 %v101
    %103 = vmatprep.subr.mxu0 0.0
    %v104 = vand.u32 %v56, 4294901760
    %105 = vmatpush1.xpose.msra.mxu0 %v104
    %106 = vmatprep.subr.mxu0 0.0
    %v107 = vand.u32 %v59, 4294901760
    %108 = vmatpush1.xpose.msra.mxu0 %v107
    %109 = vmatprep.subr.mxu0 0.0
    %v110 = vand.u32 %v62, 4294901760
    %111 = vmatpush1.xpose.msra.mxu0 %v110
    %112 = vmatprep.subr.mxu0 0.0
    %v113 = vand.u32 %v65, 4294901760
    %114 = vmatpush1.xpose.msra.mxu0 %v113
    %115 = vmatprep.subr.mxu0 0.0
    %v116 = vand.u32 %v68, 4294901760
    %117 = vmatpush1.xpose.msra.mxu0 %v116
    %118 = vmatprep.subr.mxu0 0.0
    %v119 = vand.u32 %v71, 4294901760
    %120 = vmatpush1.xpose.msra.mxu0 %v119
    %121 = vmatprep.subr.mxu0 0.0
    %v122 = vand.u32 %v74, 4294901760
    %123 = vmatpush1.xpose.msra.mxu0 %v122
    %124 = vmatprep.subr.mxu0 0.0
    %v125 = vand.u32 %v77, 4294901760
    %126 = vmatpush1.xpose.msra.mxu0 %v125
    %127 = vmatprep.subr.mxu0 0.0
    %v128 = vand.u32 %v80, 4294901760
    %129 = vmatpush1.xpose.msra.mxu0 %v128
    %130 = vmatprep.subr.mxu0 0.0
    %v131 = vand.u32 %v83, 4294901760
    %132 = vmatpush1.xpose.msra.mxu0 %v131
    %133 = vmatprep.subr.mxu0 0.0
    %v134 = vand.u32 %v86, 4294901760
    %135 = vmatpush1.xpose.msra.mxu0 %v134
    %136 = vmatprep.subr.mxu0 0.0
    %v137 = vand.u32 %v89, 4294901760
    %138 = vmatpush1.xpose.msra.mxu0 %v137
    %139 = vmatprep.subr.mxu0 0.0
    %140 = vmatpush1.xpose.msra.mxu0 0.0
    %141 = vmatprep.subr.mxu0 0.0
    %142 = vmatpush1.xpose.msra.mxu0 0.0
    %143 = vmatprep.subr.mxu0 0.0
    %144 = vmatpush1.xpose.msra.mxu0 0.0
    %145 = vmatprep.subr.mxu0 0.0
    %146 = vmatpush1.xpose.msra.mxu0 0.0
    %147 = vmatprep.subr.mxu0 0.0
    %148 = vmatpush1.xpose.msra.mxu0 0.0
    %149 = vmatprep.subr.mxu0 0.0
    %150 = vmatpush1.xpose.msra.mxu0 0.0
    %151 = vmatprep.subr.mxu0 0.0
    %152 = vmatpush1.xpose.msra.mxu0 0.0
    %153 = vmatprep.subr.mxu0 0.0
    %154 = vmatpush1.xpose.msra.mxu0 0.0
    %155 = vmatprep.subr.mxu0 0.0
    %156 = vmatpush1.xpose.msra.mxu0 0.0
    %157 = vmatprep.subr.mxu0 0.0
    %158 = vmatpush1.xpose.msra.mxu0 0.0
    %159 = vmatprep.subr.mxu0 0.0
    %160 = vmatpush1.xpose.msra.mxu0 0.0
    %161 = vmatprep.subr.mxu0 0.0
    %162 = vmatpush1.xpose.msra.mxu0 0.0
    %163 = vmatprep.subr.mxu0 0.0
    %164 = vmatpush1.xpose.msra.mxu0 0.0
    %165 = vmatprep.subr.mxu0 0.0
    %166 = vmatpush1.xpose.msra.mxu0 0.0
    %167 = vmatprep.subr.mxu0 0.0
    %168 = vmatpush1.xpose.msra.mxu0 0.0
    %169 = vmatprep.subr.mxu0 0.0
    %170 = vmatpush1.xpose.msra.mxu0 0.0
    %171 = vmatprep.mubr.f32.mxu0 0.0
    %v172 = vand.u32 %v41, 4294901760
    %v173 = vsub.f32 %v41, %v172
    %v174 = vand.u32 %v173, 4294901760
    %v175 = vsub.f32 %v173, %v174
    %v176 = vand.u32 %v175, 4294901760
    %177 = vmatmul.mubr.f32.gmra.mrb[0].mxu0 %v176
    %v178 = vpop.f32.mrb[0].mxu0
    %v179 = vadd.f32 0.0, %v178
    %v180 = vpop.f32.mrb[0].mxu0
    %181 = vdwg.mxu0
    %182 = vmatprep.subr.mxu0 0.0
    %v183 = vand.u32 %v44, 4294901760
    %v184 = vsub.f32 %v44, %v183
    %v185 = vand.u32 %v184, 4294901760
    %v186 = vsub.f32 %v184, %v185
    %v187 = vand.u32 %v186, 4294901760
    %188 = vmatpush1.xpose.msra.mxu0 %v187
    %189 = vmatprep.subr.mxu0 0.0
    %v190 = vand.u32 %v47, 4294901760
    %v191 = vsub.f32 %v47, %v190
    %v192 = vand.u32 %v191, 4294901760
    %v193 = vsub.f32 %v191, %v192
    %v194 = vand.u32 %v193, 4294901760
    %195 = vmatpush1.xpose.msra.mxu0 %v194
    %196 = vmatprep.subr.mxu0 0.0
    %v197 = vand.u32 %v50, 4294901760
    %v198 = vsub.f32 %v50, %v197
    %v199 = vand.u32 %v198, 4294901760
    %v200 = vsub.f32 %v198, %v199
    %v201 = vand.u32 %v200, 4294901760
    %202 = vmatpush1.xpose.msra.mxu0 %v201
    %203 = vmatprep.subr.mxu0 0.0
    %v204 = vand.u32 %v53, 4294901760
    %v205 = vsub.f32 %v53, %v204
    %v206 = vand.u32 %v205, 4294901760
    %v207 = vsub.f32 %v205, %v206
    %v208 = vand.u32 %v207, 4294901760
    %209 = vmatpush1.xpose.msra.mxu0 %v208
    %210 = vmatprep.subr.mxu0 0.0
    %v211 = vand.u32 %v56, 4294901760
    %v212 = vsub.f32 %v56, %v211
    %v213 = vand.u32 %v212, 4294901760
    %v214 = vsub.f32 %v212, %v213
    %v215 = vand.u32 %v214, 4294901760
    %216 = vmatpush1.xpose.msra.mxu0 %v215
    %217 = vmatprep.subr.mxu0 0.0
    %v218 = vand.u32 %v59, 4294901760
    %v219 = vsub.f32 %v59, %v218
    %v220 = vand.u32 %v219, 4294901760
    %v221 = vsub.f32 %v219, %v220
    %v222 = vand.u32 %v221, 4294901760
    %223 = vmatpush1.xpose.msra.mxu0 %v222
    %224 = vmatprep.subr.mxu0 0.0
    %v225 = vand.u32 %v62, 4294901760
    %v226 = vsub.f32 %v62, %v225
    %v227 = vand.u32 %v226, 4294901760
    %v228 = vsub.f32 %v226, %v227
    %v229 = vand.u32 %v228, 4294901760
    %230 = vmatpush1.xpose.msra.mxu0 %v229
    %231 = vmatprep.subr.mxu0 0.0
    %v232 = vand.u32 %v65, 4294901760
    %v233 = vsub.f32 %v65, %v232
    %v234 = vand.u32 %v233, 4294901760
    %v235 = vsub.f32 %v233, %v234
    %v236 = vand.u32 %v235, 4294901760
    %237 = vmatpush1.xpose.msra.mxu0 %v236
    %238 = vmatprep.subr.mxu0 0.0
    %v239 = vand.u32 %v68, 4294901760
    %v240 = vsub.f32 %v68, %v239
    %v241 = vand.u32 %v240, 4294901760
    %v242 = vsub.f32 %v240, %v241
    %v243 = vand.u32 %v242, 4294901760
    %244 = vmatpush1.xpose.msra.mxu0 %v243
    %245 = vmatprep.subr.mxu0 0.0
    %v246 = vand.u32 %v71, 4294901760
    %v247 = vsub.f32 %v71, %v246
    %v248 = vand.u32 %v247, 4294901760
    %v249 = vsub.f32 %v247, %v248
    %v250 = vand.u32 %v249, 4294901760
    %251 = vmatpush1.xpose.msra.mxu0 %v250
    %252 = vmatprep.subr.mxu0 0.0
    %v253 = vand.u32 %v74, 4294901760
    %v254 = vsub.f32 %v74, %v253
    %v255 = vand.u32 %v254, 4294901760
    %v256 = vsub.f32 %v254, %v255
    %v257 = vand.u32 %v256, 4294901760
    %258 = vmatpush1.xpose.msra.mxu0 %v257
    %259 = vmatprep.subr.mxu0 0.0
    %v260 = vand.u32 %v77, 4294901760
    %v261 = vsub.f32 %v77, %v260
    %v262 = vand.u32 %v261, 4294901760
    %v263 = vsub.f32 %v261, %v262
    %v264 = vand.u32 %v263, 4294901760
    %265 = vmatpush1.xpose.msra.mxu0 %v264
    %266 = vmatprep.subr.mxu0 0.0
    %v267 = vand.u32 %v80, 4294901760
    %v268 = vsub.f32 %v80, %v267
    %v269 = vand.u32 %v268, 4294901760
    %v270 = vsub.f32 %v268, %v269
    %v271 = vand.u32 %v270, 4294901760
    %272 = vmatpush1.xpose.msra.mxu0 %v271
    %273 = vmatprep.subr.mxu0 0.0
    %v274 = vand.u32 %v83, 4294901760
    %v275 = vsub.f32 %v83, %v274
    %v276 = vand.u32 %v275, 4294901760
    %v277 = vsub.f32 %v275, %v276
    %v278 = vand.u32 %v277, 4294901760
    %279 = vmatpush1.xpose.msra.mxu0 %v278
    %280 = vmatprep.subr.mxu0 0.0
    %v281 = vand.u32 %v86, 4294901760
    %v282 = vsub.f32 %v86, %v281
    %v283 = vand.u32 %v282, 4294901760
    %v284 = vsub.f32 %v282, %v283
    %v285 = vand.u32 %v284, 4294901760
    %286 = vmatpush1.xpose.msra.mxu0 %v285
    %287 = vmatprep.subr.mxu0 0.0
    %v288 = vand.u32 %v89, 4294901760
    %v289 = vsub.f32 %v89, %v288
    %v290 = vand.u32 %v289, 4294901760
    %v291 = vsub.f32 %v289, %v290
    %v292 = vand.u32 %v291, 4294901760
    %293 = vmatpush1.xpose.msra.mxu0 %v292
    %294 = vmatprep.subr.mxu0 0.0
    %295 = vmatpush1.xpose.msra.mxu0 0.0
    %296 = vmatprep.subr.mxu0 0.0
    %297 = vmatpush1.xpose.msra.mxu0 0.0
    %298 = vmatprep.subr.mxu0 0.0
    %299 = vmatpush1.xpose.msra.mxu0 0.0
    %300 = vmatprep.subr.mxu0 0.0
    %301 = vmatpush1.xpose.msra.mxu0 0.0
    %302 = vmatprep.subr.mxu0 0.0
    %303 = vmatpush1.xpose.msra.mxu0 0.0
    %304 = vmatprep.subr.mxu0 0.0
    %305 = vmatpush1.xpose.msra.mxu0 0.0
    %306 = vmatprep.subr.mxu0 0.0
    %307 = vmatpush1.xpose.msra.mxu0 0.0
    %308 = vmatprep.subr.mxu0 0.0
    %309 = vmatpush1.xpose.msra.mxu0 0.0
    %310 = vmatprep.subr.mxu0 0.0
    %311 = vmatpush1.xpose.msra.mxu0 0.0
    %312 = vmatprep.subr.mxu0 0.0
    %313 = vmatpush1.xpose.msra.mxu0 0.0
    %314 = vmatprep.subr.mxu0 0.0
    %315 = vmatpush1.xpose.msra.mxu0 0.0
    %316 = vmatprep.subr.mxu0 0.0
    %317 = vmatpush1.xpose.msra.mxu0 0.0
    %318 = vmatprep.subr.mxu0 0.0
    %319 = vmatpush1.xpose.msra.mxu0 0.0
    %320 = vmatprep.subr.mxu0 0.0
    %321 = vmatpush1.xpose.msra.mxu0 0.0
    %322 = vmatprep.subr.mxu0 0.0
    %323 = vmatpush1.xpose.msra.mxu0 0.0
    %324 = vmatprep.subr.mxu0 0.0
    %325 = vmatpush1.xpose.msra.mxu0 0.0
    %326 = vmatprep.mubr.f32.mxu0 0.0
    %v327 = vand.u32 %v41, 4294901760
    %328 = vmatmul.mubr.f32.gmra.mrb[0].mxu0 %v327
    %v329 = vpop.f32.mrb[0].mxu0
    %v330 = vadd.f32 %v179, %v329
    %v331 = vpop.f32.mrb[0].mxu0
    %332 = vdwg.mxu0
    %333 = vmatprep.subr.mxu0 0.0
    %v334 = vand.u32 %v44, 4294901760
    %v335 = vsub.f32 %v44, %v334
    %336 = vmatpush1.xpose.msra.mxu0 %v335
    %337 = vmatprep.subr.mxu0 0.0
    %v338 = vand.u32 %v47, 4294901760
    %v339 = vsub.f32 %v47, %v338
    %340 = vmatpush1.xpose.msra.mxu0 %v339
    %341 = vmatprep.subr.mxu0 0.0
    %v342 = vand.u32 %v50, 4294901760
    %v343 = vsub.f32 %v50, %v342
    %344 = vmatpush1.xpose.msra.mxu0 %v343
    %345 = vmatprep.subr.mxu0 0.0
    %v346 = vand.u32 %v53, 4294901760
    %v347 = vsub.f32 %v53, %v346
    %348 = vmatpush1.xpose.msra.mxu0 %v347
    %349 = vmatprep.subr.mxu0 0.0
    %v350 = vand.u32 %v56, 4294901760
    %v351 = vsub.f32 %v56, %v350
    %352 = vmatpush1.xpose.msra.mxu0 %v351
    %353 = vmatprep.subr.mxu0 0.0
    %v354 = vand.u32 %v59, 4294901760
    %v355 = vsub.f32 %v59, %v354
    %356 = vmatpush1.xpose.msra.mxu0 %v355
    %357 = vmatprep.subr.mxu0 0.0
    %v358 = vand.u32 %v62, 4294901760
    %v359 = vsub.f32 %v62, %v358
    %360 = vmatpush1.xpose.msra.mxu0 %v359
    %361 = vmatprep.subr.mxu0 0.0
    %v362 = vand.u32 %v65, 4294901760
    %v363 = vsub.f32 %v65, %v362
    %364 = vmatpush1.xpose.msra.mxu0 %v363
    %365 = vmatprep.subr.mxu0 0.0
    %v366 = vand.u32 %v68, 4294901760
    %v367 = vsub.f32 %v68, %v366
    %368 = vmatpush1.xpose.msra.mxu0 %v367
    %369 = vmatprep.subr.mxu0 0.0
    %v370 = vand.u32 %v71, 4294901760
    %v371 = vsub.f32 %v71, %v370
    %372 = vmatpush1.xpose.msra.mxu0 %v371
    %373 = vmatprep.subr.mxu0 0.0
    %v374 = vand.u32 %v74, 4294901760
    %v375 = vsub.f32 %v74, %v374
    %376 = vmatpush1.xpose.msra.mxu0 %v375
    %377 = vmatprep.subr.mxu0 0.0
    %v378 = vand.u32 %v77, 4294901760
    %v379 = vsub.f32 %v77, %v378
    %380 = vmatpush1.xpose.msra.mxu0 %v379
    %381 = vmatprep.subr.mxu0 0.0
    %v382 = vand.u32 %v80, 4294901760
    %v383 = vsub.f32 %v80, %v382
    %384 = vmatpush1.xpose.msra.mxu0 %v383
    %385 = vmatprep.subr.mxu0 0.0
    %v386 = vand.u32 %v83, 4294901760
    %v387 = vsub.f32 %v83, %v386
    %388 = vmatpush1.xpose.msra.mxu0 %v387
    %389 = vmatprep.subr.mxu0 0.0
    %v390 = vand.u32 %v86, 4294901760
    %v391 = vsub.f32 %v86, %v390
    %392 = vmatpush1.xpose.msra.mxu0 %v391
    %393 = vmatprep.subr.mxu0 0.0
    %v394 = vand.u32 %v89, 4294901760
    %v395 = vsub.f32 %v89, %v394
    %396 = vmatpush1.xpose.msra.mxu0 %v395
    %397 = vmatprep.subr.mxu0 0.0
    %398 = vmatpush1.xpose.msra.mxu0 0.0
    %399 = vmatprep.subr.mxu0 0.0
    %400 = vmatpush1.xpose.msra.mxu0 0.0
    %401 = vmatprep.subr.mxu0 0.0
    %402 = vmatpush1.xpose.msra.mxu0 0.0
    %403 = vmatprep.subr.mxu0 0.0
    %404 = vmatpush1.xpose.msra.mxu0 0.0
    %405 = vmatprep.subr.mxu0 0.0
    %406 = vmatpush1.xpose.msra.mxu0 0.0
    %407 = vmatprep.subr.mxu0 0.0
    %408 = vmatpush1.xpose.msra.mxu0 0.0
    %409 = vmatprep.subr.mxu0 0.0
    %410 = vmatpush1.xpose.msra.mxu0 0.0
    %411 = vmatprep.subr.mxu0 0.0
    %412 = vmatpush1.xpose.msra.mxu0 0.0
    %413 = vmatprep.subr.mxu0 0.0
    %414 = vmatpush1.xpose.msra.mxu0 0.0
    %415 = vmatprep.subr.mxu0 0.0
    %416 = vmatpush1.xpose.msra.mxu0 0.0
    %417 = vmatprep.subr.mxu0 0.0
    %418 = vmatpush1.xpose.msra.mxu0 0.0
    %419 = vmatprep.subr.mxu0 0.0
    %420 = vmatpush1.xpose.msra.mxu0 0.0
    %421 = vmatprep.subr.mxu0 0.0
    %422 = vmatpush1.xpose.msra.mxu0 0.0
    %423 = vmatprep.subr.mxu0 0.0
    %424 = vmatpush1.xpose.msra.mxu0 0.0
    %425 = vmatprep.subr.mxu0 0.0
    %426 = vmatpush1.xpose.msra.mxu0 0.0
    %427 = vmatprep.subr.mxu0 0.0
    %428 = vmatpush1.xpose.msra.mxu0 0.0
    %429 = vmatprep.mubr.f32.mxu0 0.0
    %v430 = vand.u32 %v41, 4294901760
    %v431 = vsub.f32 %v41, %v430
    %432 = vmatmul.mubr.f32.gmra.mrb[0].mxu0 %v431
    %v433 = vpop.f32.mrb[0].mxu0
    %v434 = vadd.f32 %v330, %v433
    %v435 = vpop.f32.mrb[0].mxu0
    %436 = vdwg.mxu0
    %437 = vmatprep.subr.mxu0 0.0
    %v438 = vand.u32 %v44, 4294901760
    %439 = vmatpush1.xpose.msra.mxu0 %v438
    %440 = vmatprep.subr.mxu0 0.0
    %v441 = vand.u32 %v47, 4294901760
    %442 = vmatpush1.xpose.msra.mxu0 %v441
    %443 = vmatprep.subr.mxu0 0.0
    %v444 = vand.u32 %v50, 4294901760
    %445 = vmatpush1.xpose.msra.mxu0 %v444
    %446 = vmatprep.subr.mxu0 0.0
    %v447 = vand.u32 %v53, 4294901760
    %448 = vmatpush1.xpose.msra.mxu0 %v447
    %449 = vmatprep.subr.mxu0 0.0
    %v450 = vand.u32 %v56, 4294901760
    %451 = vmatpush1.xpose.msra.mxu0 %v450
    %452 = vmatprep.subr.mxu0 0.0
    %v453 = vand.u32 %v59, 4294901760
    %454 = vmatpush1.xpose.msra.mxu0 %v453
    %455 = vmatprep.subr.mxu0 0.0
    %v456 = vand.u32 %v62, 4294901760
    %457 = vmatpush1.xpose.msra.mxu0 %v456
    %458 = vmatprep.subr.mxu0 0.0
    %v459 = vand.u32 %v65, 4294901760
    %460 = vmatpush1.xpose.msra.mxu0 %v459
    %461 = vmatprep.subr.mxu0 0.0
    %v462 = vand.u32 %v68, 4294901760
    %463 = vmatpush1.xpose.msra.mxu0 %v462
    %464 = vmatprep.subr.mxu0 0.0
    %v465 = vand.u32 %v71, 4294901760
    %466 = vmatpush1.xpose.msra.mxu0 %v465
    %467 = vmatprep.subr.mxu0 0.0
    %v468 = vand.u32 %v74, 4294901760
    %469 = vmatpush1.xpose.msra.mxu0 %v468
    %470 = vmatprep.subr.mxu0 0.0
    %v471 = vand.u32 %v77, 4294901760
    %472 = vmatpush1.xpose.msra.mxu0 %v471
    %473 = vmatprep.subr.mxu0 0.0
    %v474 = vand.u32 %v80, 4294901760
    %475 = vmatpush1.xpose.msra.mxu0 %v474
    %476 = vmatprep.subr.mxu0 0.0
    %v477 = vand.u32 %v83, 4294901760
    %478 = vmatpush1.xpose.msra.mxu0 %v477
    %479 = vmatprep.subr.mxu0 0.0
    %v480 = vand.u32 %v86, 4294901760
    %481 = vmatpush1.xpose.msra.mxu0 %v480
    %482 = vmatprep.subr.mxu0 0.0
    %v483 = vand.u32 %v89, 4294901760
    %484 = vmatpush1.xpose.msra.mxu0 %v483
    %485 = vmatprep.subr.mxu0 0.0
    %486 = vmatpush1.xpose.msra.mxu0 0.0
    %487 = vmatprep.subr.mxu0 0.0
    %488 = vmatpush1.xpose.msra.mxu0 0.0
    %489 = vmatprep.subr.mxu0 0.0
    %490 = vmatpush1.xpose.msra.mxu0 0.0
    %491 = vmatprep.subr.mxu0 0.0
    %492 = vmatpush1.xpose.msra.mxu0 0.0
    %493 = vmatprep.subr.mxu0 0.0
    %494 = vmatpush1.xpose.msra.mxu0 0.0
    %495 = vmatprep.subr.mxu0 0.0
    %496 = vmatpush1.xpose.msra.mxu0 0.0
    %497 = vmatprep.subr.mxu0 0.0
    %498 = vmatpush1.xpose.msra.mxu0 0.0
    %499 = vmatprep.subr.mxu0 0.0
    %500 = vmatpush1.xpose.msra.mxu0 0.0
    %501 = vmatprep.subr.mxu0 0.0
    %502 = vmatpush1.xpose.msra.mxu0 0.0
    %503 = vmatprep.subr.mxu0 0.0
    %504 = vmatpush1.xpose.msra.mxu0 0.0
    %505 = vmatprep.subr.mxu0 0.0
    %506 = vmatpush1.xpose.msra.mxu0 0.0
    %507 = vmatprep.subr.mxu0 0.0
    %508 = vmatpush1.xpose.msra.mxu0 0.0
    %509 = vmatprep.subr.mxu0 0.0
    %510 = vmatpush1.xpose.msra.mxu0 0.0
    %511 = vmatprep.subr.mxu0 0.0
    %512 = vmatpush1.xpose.msra.mxu0 0.0
    %513 = vmatprep.subr.mxu0 0.0
    %514 = vmatpush1.xpose.msra.mxu0 0.0
    %515 = vmatprep.subr.mxu0 0.0
    %516 = vmatpush1.xpose.msra.mxu0 0.0
    %517 = vmatprep.mubr.f32.mxu0 0.0
    %v518 = vand.u32 %v41, 4294901760
    %v519 = vsub.f32 %v41, %v518
    %v520 = vand.u32 %v519, 4294901760
    %521 = vmatmul.mubr.f32.gmra.mrb[0].mxu0 %v520
    %v522 = vpop.f32.mrb[0].mxu0
    %v523 = vadd.f32 %v434, %v522
    %v524 = vpop.f32.mrb[0].mxu0
    %525 = vdwg.mxu0
    %526 = vmatprep.subr.mxu0 0.0
    %v527 = vand.u32 %v44, 4294901760
    %v528 = vsub.f32 %v44, %v527
    %v529 = vand.u32 %v528, 4294901760
    %530 = vmatpush1.xpose.msra.mxu0 %v529
    %531 = vmatprep.subr.mxu0 0.0
    %v532 = vand.u32 %v47, 4294901760
    %v533 = vsub.f32 %v47, %v532
    %v534 = vand.u32 %v533, 4294901760
    %535 = vmatpush1.xpose.msra.mxu0 %v534
    %536 = vmatprep.subr.mxu0 0.0
    %v537 = vand.u32 %v50, 4294901760
    %v538 = vsub.f32 %v50, %v537
    %v539 = vand.u32 %v538, 4294901760
    %540 = vmatpush1.xpose.msra.mxu0 %v539
    %541 = vmatprep.subr.mxu0 0.0
    %v542 = vand.u32 %v53, 4294901760
    %v543 = vsub.f32 %v53, %v542
    %v544 = vand.u32 %v543, 4294901760
    %545 = vmatpush1.xpose.msra.mxu0 %v544
    %546 = vmatprep.subr.mxu0 0.0
    %v547 = vand.u32 %v56, 4294901760
    %v548 = vsub.f32 %v56, %v547
    %v549 = vand.u32 %v548, 4294901760
    %550 = vmatpush1.xpose.msra.mxu0 %v549
    %551 = vmatprep.subr.mxu0 0.0
    %v552 = vand.u32 %v59, 4294901760
    %v553 = vsub.f32 %v59, %v552
    %v554 = vand.u32 %v553, 4294901760
    %555 = vmatpush1.xpose.msra.mxu0 %v554
    %556 = vmatprep.subr.mxu0 0.0
    %v557 = vand.u32 %v62, 4294901760
    %v558 = vsub.f32 %v62, %v557
    %v559 = vand.u32 %v558, 4294901760
    %560 = vmatpush1.xpose.msra.mxu0 %v559
    %561 = vmatprep.subr.mxu0 0.0
    %v562 = vand.u32 %v65, 4294901760
    %v563 = vsub.f32 %v65, %v562
    %v564 = vand.u32 %v563, 4294901760
    %565 = vmatpush1.xpose.msra.mxu0 %v564
    %566 = vmatprep.subr.mxu0 0.0
    %v567 = vand.u32 %v68, 4294901760
    %v568 = vsub.f32 %v68, %v567
    %v569 = vand.u32 %v568, 4294901760
    %570 = vmatpush1.xpose.msra.mxu0 %v569
    %571 = vmatprep.subr.mxu0 0.0
    %v572 = vand.u32 %v71, 4294901760
    %v573 = vsub.f32 %v71, %v572
    %v574 = vand.u32 %v573, 4294901760
    %575 = vmatpush1.xpose.msra.mxu0 %v574
    %576 = vmatprep.subr.mxu0 0.0
    %v577 = vand.u32 %v74, 4294901760
    %v578 = vsub.f32 %v74, %v577
    %v579 = vand.u32 %v578, 4294901760
    %580 = vmatpush1.xpose.msra.mxu0 %v579
    %581 = vmatprep.subr.mxu0 0.0
    %v582 = vand.u32 %v77, 4294901760
    %v583 = vsub.f32 %v77, %v582
    %v584 = vand.u32 %v583, 4294901760
    %585 = vmatpush1.xpose.msra.mxu0 %v584
    %586 = vmatprep.subr.mxu0 0.0
    %v587 = vand.u32 %v80, 4294901760
    %v588 = vsub.f32 %v80, %v587
    %v589 = vand.u32 %v588, 4294901760
    %590 = vmatpush1.xpose.msra.mxu0 %v589
    %591 = vmatprep.subr.mxu0 0.0
    %v592 = vand.u32 %v83, 4294901760
    %v593 = vsub.f32 %v83, %v592
    %v594 = vand.u32 %v593, 4294901760
    %595 = vmatpush1.xpose.msra.mxu0 %v594
    %596 = vmatprep.subr.mxu0 0.0
    %v597 = vand.u32 %v86, 4294901760
    %v598 = vsub.f32 %v86, %v597
    %v599 = vand.u32 %v598, 4294901760
    %600 = vmatpush1.xpose.msra.mxu0 %v599
    %601 = vmatprep.subr.mxu0 0.0
    %v602 = vand.u32 %v89, 4294901760
    %v603 = vsub.f32 %v89, %v602
    %v604 = vand.u32 %v603, 4294901760
    %605 = vmatpush1.xpose.msra.mxu0 %v604
    %606 = vmatprep.subr.mxu0 0.0
    %607 = vmatpush1.xpose.msra.mxu0 0.0
    %608 = vmatprep.subr.mxu0 0.0
    %609 = vmatpush1.xpose.msra.mxu0 0.0
    %610 = vmatprep.subr.mxu0 0.0
    %611 = vmatpush1.xpose.msra.mxu0 0.0
    %612 = vmatprep.subr.mxu0 0.0
    %613 = vmatpush1.xpose.msra.mxu0 0.0
    %614 = vmatprep.subr.mxu0 0.0
    %615 = vmatpush1.xpose.msra.mxu0 0.0
    %616 = vmatprep.subr.mxu0 0.0
    %617 = vmatpush1.xpose.msra.mxu0 0.0
    %618 = vmatprep.subr.mxu0 0.0
    %619 = vmatpush1.xpose.msra.mxu0 0.0
    %620 = vmatprep.subr.mxu0 0.0
    %621 = vmatpush1.xpose.msra.mxu0 0.0
    %622 = vmatprep.subr.mxu0 0.0
    %623 = vmatpush1.xpose.msra.mxu0 0.0
    %624 = vmatprep.subr.mxu0 0.0
    %625 = vmatpush1.xpose.msra.mxu0 0.0
    %626 = vmatprep.subr.mxu0 0.0
    %627 = vmatpush1.xpose.msra.mxu0 0.0
    %628 = vmatprep.subr.mxu0 0.0
    %629 = vmatpush1.xpose.msra.mxu0 0.0
    %630 = vmatprep.subr.mxu0 0.0
    %631 = vmatpush1.xpose.msra.mxu0 0.0
    %632 = vmatprep.subr.mxu0 0.0
    %633 = vmatpush1.xpose.msra.mxu0 0.0
    %634 = vmatprep.subr.mxu0 0.0
    %635 = vmatpush1.xpose.msra.mxu0 0.0
    %636 = vmatprep.subr.mxu0 0.0
    %637 = vmatpush1.xpose.msra.mxu0 0.0
    %638 = vmatprep.mubr.f32.mxu0 0.0
    %v639 = vand.u32 %v41, 4294901760
    %640 = vmatmul.mubr.f32.gmra.mrb[0].mxu0 %v639
    %v641 = vpop.f32.mrb[0].mxu0
    %v642 = vadd.f32 %v523, %v641
    %v643 = vpop.f32.mrb[0].mxu0
    %644 = vdwg.mxu0
    %645 = vmatprep.subr.mxu0 0.0
    %v646 = vand.u32 %v44, 4294901760
    %647 = vmatpush1.xpose.msra.mxu0 %v646
    %648 = vmatprep.subr.mxu0 0.0
    %v649 = vand.u32 %v47, 4294901760
    %650 = vmatpush1.xpose.msra.mxu0 %v649
    %651 = vmatprep.subr.mxu0 0.0
    %v652 = vand.u32 %v50, 4294901760
    %653 = vmatpush1.xpose.msra.mxu0 %v652
    %654 = vmatprep.subr.mxu0 0.0
    %v655 = vand.u32 %v53, 4294901760
    %656 = vmatpush1.xpose.msra.mxu0 %v655
    %657 = vmatprep.subr.mxu0 0.0
    %v658 = vand.u32 %v56, 4294901760
    %659 = vmatpush1.xpose.msra.mxu0 %v658
    %660 = vmatprep.subr.mxu0 0.0
    %v661 = vand.u32 %v59, 4294901760
    %662 = vmatpush1.xpose.msra.mxu0 %v661
    %663 = vmatprep.subr.mxu0 0.0
    %v664 = vand.u32 %v62, 4294901760
    %665 = vmatpush1.xpose.msra.mxu0 %v664
    %666 = vmatprep.subr.mxu0 0.0
    %v667 = vand.u32 %v65, 4294901760
    %668 = vmatpush1.xpose.msra.mxu0 %v667
    %669 = vmatprep.subr.mxu0 0.0
    %v670 = vand.u32 %v68, 4294901760
    %671 = vmatpush1.xpose.msra.mxu0 %v670
    %672 = vmatprep.subr.mxu0 0.0
    %v673 = vand.u32 %v71, 4294901760
    %674 = vmatpush1.xpose.msra.mxu0 %v673
    %675 = vmatprep.subr.mxu0 0.0
    %v676 = vand.u32 %v74, 4294901760
    %677 = vmatpush1.xpose.msra.mxu0 %v676
    %678 = vmatprep.subr.mxu0 0.0
    %v679 = vand.u32 %v77, 4294901760
    %680 = vmatpush1.xpose.msra.mxu0 %v679
    %681 = vmatprep.subr.mxu0 0.0
    %v682 = vand.u32 %v80, 4294901760
    %683 = vmatpush1.xpose.msra.mxu0 %v682
    %684 = vmatprep.subr.mxu0 0.0
    %v685 = vand.u32 %v83, 4294901760
    %686 = vmatpush1.xpose.msra.mxu0 %v685
    %687 = vmatprep.subr.mxu0 0.0
    %v688 = vand.u32 %v86, 4294901760
    %689 = vmatpush1.xpose.msra.mxu0 %v688
    %690 = vmatprep.subr.mxu0 0.0
    %v691 = vand.u32 %v89, 4294901760
    %692 = vmatpush1.xpose.msra.mxu0 %v691
    %693 = vmatprep.subr.mxu0 0.0
    %694 = vmatpush1.xpose.msra.mxu0 0.0
    %695 = vmatprep.subr.mxu0 0.0
    %696 = vmatpush1.xpose.msra.mxu0 0.0
    %697 = vmatprep.subr.mxu0 0.0
    %698 = vmatpush1.xpose.msra.mxu0 0.0
    %699 = vmatprep.subr.mxu0 0.0
    %700 = vmatpush1.xpose.msra.mxu0 0.0
    %701 = vmatprep.subr.mxu0 0.0
    %702 = vmatpush1.xpose.msra.mxu0 0.0
    %703 = vmatprep.subr.mxu0 0.0
    %704 = vmatpush1.xpose.msra.mxu0 0.0
    %705 = vmatprep.subr.mxu0 0.0
    %706 = vmatpush1.xpose.msra.mxu0 0.0
    %707 = vmatprep.subr.mxu0 0.0
    %708 = vmatpush1.xpose.msra.mxu0 0.0
    %709 = vmatprep.subr.mxu0 0.0
    %710 = vmatpush1.xpose.msra.mxu0 0.0
    %711 = vmatprep.subr.mxu0 0.0
    %712 = vmatpush1.xpose.msra.mxu0 0.0
    %713 = vmatprep.subr.mxu0 0.0
    %714 = vmatpush1.xpose.msra.mxu0 0.0
    %715 = vmatprep.subr.mxu0 0.0
    %716 = vmatpush1.xpose.msra.mxu0 0.0
    %717 = vmatprep.subr.mxu0 0.0
    %718 = vmatpush1.xpose.msra.mxu0 0.0
    %719 = vmatprep.subr.mxu0 0.0
    %720 = vmatpush1.xpose.msra.mxu0 0.0
    %721 = vmatprep.subr.mxu0 0.0
    %722 = vmatpush1.xpose.msra.mxu0 0.0
    %723 = vmatprep.subr.mxu0 0.0
    %724 = vmatpush1.xpose.msra.mxu0 0.0
    %725 = vmatprep.mubr.f32.mxu0 0.0
    %v726 = vand.u32 %v41, 4294901760
    %727 = vmatmul.mubr.f32.gmra.mrb[0].mxu0 %v726
    %v728 = vpop.f32.mrb[0].mxu0
    %v729 = vadd.f32 %v642, %v728
    %v730 = vpop.f32.mrb[0].mxu0
    %731 = vdwg.mxu0
    %v732 = vadd.f32 %v21, %v729
    %733 = vst [vmem:[#allocation2] sm:$0x3] %v732
    // Predicated region
    $region18: #{tpu_custom_call.1} parent=1 // pred_check
      %p734 = pneg %p16
    $region19: #{tpu_custom_call.1} parent=1 // pred_check_branch
      %736 = sbr.rel (%p734) target = $region21
    $region20: #{tpu_custom_call.1} parent=1 // pred_region
      %v737 = vld [vmem:[#allocation2] sm:$0x3]
      %s738 = sld [smem:[#allocation3]]
      %v739 = vstv %s738
      %v740 = vadd.f32 %v737, %v739
      %v741 = vmul.f32 %v740, 0.01
      %v742 = vmax.f32 %v740, %v741
      %743 = vst [vmem:[#allocation4] sm:$0x3] %v742
    $region21: #{tpu_custom_call.1} parent=1 // pred_fallthru
      _
    // Predicated region
    $region22: #{tpu_custom_call.1} parent=1 // pred_check
      _
    $region23: #{tpu_custom_call.1} parent=1 // pred_check_branch
      %745 = sbr.rel (0) target = $region25
    $region24: #{tpu_custom_call.1} parent=1 // pred_region
      %s747 = ssub.s32 32, 32
      %748 = vsyncadd [#allocation5], %s747
      %s750 = sshll.u32 [#allocation4], 4
      %s751 = int_to_ptr.vmem [resolvable:$true] %s750
      %753 = dma.vmem_to_hbm [thread:$0]  %s751, 32, %s3, [#allocation5]
    $region25: #{tpu_custom_call.1} parent=1 // pred_fallthru
      _
    // Predicated region
    $region26: #{tpu_custom_call.1} parent=1 // pred_check
      _
    $region27: #{tpu_custom_call.1} parent=1 // pred_check_branch
      %755 = sbr.rel (0) target = $region29
    $region28: #{tpu_custom_call.1} parent=1 // pred_region
      %756 = dma.done [#allocation5], 32
    $region29: #{tpu_custom_call.1} parent=1 // pred_fallthru
      _
    %757 = vsyncpa [#allocation5], 1

</llo_original>
